<compile_context>
chip_gen: v7x
topology: tpu7x:2x2x1
jax: 0.10.0
libtpu: 0.0.40
codegen_flags: <defaults>
</compile_context>

<pallas_src>
from typing import NamedTuple

import jax
import jax.numpy as jnp
from jax.experimental import pallas as pl
from jax.experimental.pallas import tpu as pltpu

LANE = 128          # vreg lane width
BATCH_ALIGN = 16    # bf16 packs 16 rows per sublane group -> 16-aligned batch tiles
MAX_BATCH_TILE = 2048


def _round_up(x, m):
    return (x + m - 1) // m * m


def _device_kind():
    try:
        return jax.devices()[0].device_kind.lower()
    except Exception:
        return ""


def _num_tensorcores():
    kind = _device_kind()
    # v4/v5p megacore and v7x expose 2 TensorCores that the "parallel" grid axis
    # shards across; v5e/v6e have a single TC.
    return 2 if any(tag in kind for tag in ("v4", "v5p", "v7")) else 1


def _mxu_align():
    kind = _device_kind()
    # v6e/v7x MXU passes are 256 wide -> align hidden dims > 128 to 256.
    # v5e's MXU is 4x128x128, already full at 128 -- don't double the FLOPs there.
    return 256 if ("v6" in kind or "v7" in kind) else 128


class DQNMeta(NamedTuple):
    S: int
    Sp: int
    H: int
    Hp: int
    A: int
    Ap: int


def dqn_kernel(x_ref, w1_ref, b1_ref, w2_ref, b2_ref,
               w3_ref, b3_ref, w4_ref, b4_ref, o_ref):
    """Fused 4-layer MLP forward for one batch tile (all weights resident in VMEM).

    x arrives f32 and is cast to bf16 in-kernel (VPU, hidden under the matmuls),
    weights are pre-padded bf16, biases f32; all MXU accumulation is f32.
    """
    x = x_ref[...].astype(jnp.bfloat16)

    h = jnp.dot(x, w1_ref[...], preferred_element_type=jnp.float32) + b1_ref[...]
    h = jnp.maximum(h, 0.0)

    h = jnp.dot(h.astype(jnp.bfloat16), w2_ref[...],
                preferred_element_type=jnp.float32) + b2_ref[...]
    h = jnp.maximum(h, 0.0)

    h = jnp.dot(h.astype(jnp.bfloat16), w3_ref[...],
                preferred_element_type=jnp.float32) + b3_ref[...]
    h = jnp.maximum(h, 0.0)

    q = jnp.dot(h.astype(jnp.bfloat16), w4_ref[...],
                preferred_element_type=jnp.float32) + b4_ref[...]
    o_ref[...] = q.astype(o_ref.dtype)


def prepare_params(params, *, mxu_align=None):
    """One-time pad + cast of (in,out) f32 weights / (1,out) biases into kernel layout.

    Hoisted out of the forward so a training/inference loop pays the ~9
    zero+scatter copies once instead of per call. Returns (padded_arrays, meta);
    `padded_arrays` is a pure-array pytree, `meta` holds the static padded dims.
    """
    if mxu_align is None:
        mxu_align = _mxu_align()

    S, H = params["w1"].shape
    A = params["w4"].shape[1]

    # fc1's contraction depth only needs bf16 sublane alignment, not 128 lanes.
    Sp = _round_up(S, BATCH_ALIGN)
    # hidden (K and N of the middle matmuls): >=128 lanes; align to the MXU pass
    # width (256 on v6e/v7x) once the real hidden exceeds 128.
    Hp = _round_up(H, LANE) if H <= LANE else _round_up(H, mxu_align)
    Ap = _round_up(A, LANE)   # lane-dense output -> unmasked full-lane stores

    def pad_w(w, rows, cols):
        out = jnp.zeros((rows, cols), jnp.bfloat16)
        return out.at[:w.shape[0], :w.shape[1]].set(w.astype(jnp.bfloat16))

    def pad_b(b, cols):
        out = jnp.zeros((1, cols), jnp.float32)
        return out.at[:, :b.shape[1]].set(b.astype(jnp.float32))

    padded = {
        "w1": pad_w(params["w1"], Sp, Hp), "b1": pad_b(params["b1"], Hp),
        "w2": pad_w(params["w2"], Hp, Hp), "b2": pad_b(params["b2"], Hp),
        "w3": pad_w(params["w3"], Hp, Hp), "b3": pad_b(params["b3"], Hp),
        "w4": pad_w(params["w4"], Hp, Ap), "b4": pad_b(params["b4"], Ap),
    }
    return padded, DQNMeta(S, Sp, H, Hp, A, Ap)


def _pick_batch_tile(B, num_cores=None):
    if num_cores is None:
        num_cores = _num_tensorcores()
    if B <= 256:
        # tiny batches: one 16-aligned tile (bf16 sublanes fully packed)
        return _round_up(B, BATCH_ALIGN)
    # big replay batches: at least `num_cores` grid steps so megacore / v7x's two
    # TensorCores both get work, with tiles up to 2048 rows to amortize the
    # ~0.35us fixed per-grid-step overhead.
    tile = _round_up(-(-B // num_cores), BATCH_ALIGN)
    return min(tile, MAX_BATCH_TILE)


def _build_call(batch_tile, meta, out_dtype, grid, B_pad, vmem_limit, cost,
                single_buffer_weights):
    Sp, Hp, Ap = meta.Sp, meta.Hp, meta.Ap

    def x_map(i):
        return (i, 0)

    def rep_map(i):
        return (0, 0)

    # Weights/biases use constant index_maps -> the block is revisited, never
    # re-fetched, so one buffer suffices and halves their VMEM footprint.
    res_kw = dict(pipeline_mode=pl.Buffered(1)) if single_buffer_weights else {}

    in_specs = [
        pl.BlockSpec((batch_tile, Sp), x_map),        # state tile (f32)
        pl.BlockSpec((Sp, Hp), rep_map, **res_kw),    # w1
        pl.BlockSpec((1, Hp), rep_map, **res_kw),     # b1
        pl.BlockSpec((Hp, Hp), rep_map, **res_kw),    # w2
        pl.BlockSpec((1, Hp), rep_map, **res_kw),     # b2
        pl.BlockSpec((Hp, Hp), rep_map, **res_kw),    # w3
        pl.BlockSpec((1, Hp), rep_map, **res_kw),     # b3
        pl.BlockSpec((Hp, Ap), rep_map, **res_kw),    # w4
        pl.BlockSpec((1, Ap), rep_map, **res_kw),     # b4
    ]
    out_spec = pl.BlockSpec((batch_tile, Ap), x_map)

    return pl.pallas_call(
        dqn_kernel,
        out_shape=jax.ShapeDtypeStruct((B_pad, Ap), out_dtype),
        grid_spec=pltpu.PrefetchScalarGridSpec(
            num_scalar_prefetch=0,
            grid=grid,
            in_specs=in_specs,
            out_specs=out_spec,
        ),
        compiler_params=pltpu.CompilerParams(
            dimension_semantics=("parallel",),
            vmem_limit_bytes=vmem_limit,
        ),
        cost_estimate=cost,
    )


def dqn_forward(state, padded, meta, *, batch_tile=None,
                out_dtype=jnp.bfloat16, return_padded=False):
    """Fused DQN forward via pallas_call.

    state:  (B, state_size) float32 (bf16 cast happens in-kernel)
    padded: arrays from prepare_params (pre-padded bf16 weights / f32 biases)
    meta:   DQNMeta from prepare_params (static dims)

    out_dtype defaults to bf16: the (batch, Ap) Q-value stream is the largest
    per-tile HBM write and Q-values feeding argmax/TD targets tolerate bf16.
    Pass return_padded=True to skip the [:B, :A] slice copy and mask/argmax
    over the first A lanes at the consumer instead.
    """
    B, S = state.shape
    assert S == meta.S, f"state feature dim {S} != prepared {meta.S}"
    Sp, Hp, Ap = meta.Sp, meta.Hp, meta.Ap

    if batch_tile is None:
        batch_tile = _pick_batch_tile(B)
    assert batch_tile % BATCH_ALIGN == 0, "batch_tile must be a multiple of 16 (bf16 rows)"
    B_pad = _round_up(B, batch_tile)
    grid = (B_pad // batch_tile,)

    x = state
    if B_pad != B or Sp != S:
        # Pad only when needed. Zero padding is exact: zero feature columns
        # contribute nothing, relu(0)=0, and padded rows are sliced off below.
        x = jnp.pad(state, ((0, B_pad - B), (0, Sp - S)))

    # Advisory cost estimate so XLA schedules/overlaps around the custom call.
    w_elems = Sp * Hp + 2 * Hp * Hp + Hp * Ap
    out_itemsize = jnp.dtype(out_dtype).itemsize
    flops = 2 * B_pad * w_elems
    bytes_accessed = (B_pad * Sp * 4            # f32 state
                      + w_elems * 2             # bf16 weights
                      + (3 * Hp + Ap) * 4       # f32 biases
                      + B_pad * Ap * out_itemsize)
    cost = pl.CostEstimate(flops=flops, transcendentals=0,
                           bytes_accessed=bytes_accessed)

    # VMEM plan: resident weights + double-buffered x/out tiles + activation headroom.
    # TODO(synk): for Hp >= 2048 on v7x (64 MiB physical VMEM) add a grid axis over
    # the hidden dim instead of just raising the limit.
    weight_bytes = 2 * w_elems + 4 * (3 * Hp + Ap)
    io_bytes = 2 * batch_tile * (Sp * 4 + Ap * out_itemsize)
    act_bytes = 4 * batch_tile * Hp * 2
    vmem_limit = int(min(100 * 2**20,
                         max(32 * 2**20,
                             2 * weight_bytes + io_bytes + act_bytes + 8 * 2**20)))

    args = (x, padded["w1"], padded["b1"], padded["w2"], padded["b2"],
            padded["w3"], padded["b3"], padded["w4"], padded["b4"])
    try:
        out_padded = _build_call(batch_tile, meta, out_dtype, grid, B_pad,
                                 vmem_limit, cost, single_buffer_weights=True)(*args)
    except Exception:
        # pl.Buffered(1) rejected on this jax/libtpu build -> default buffering.
        out_padded = _build_call(batch_tile, meta, out_dtype, grid, B_pad,
                                 vmem_limit, cost, single_buffer_weights=False)(*args)

    if return_padded:
        return out_padded
    return out_padded[:B, :meta.A]


def init_dqn_params(key, state_size, action_size, hidden_size):
    """Deterministic init matching nn.Linear's default U(-1/sqrt(fan_in), 1/sqrt(fan_in))."""
    dims = [(state_size, hidden_size),
            (hidden_size, hidden_size),
            (hidden_size, hidden_size),
            (hidden_size, action_size)]
    params = {}
    keys = jax.random.split(key, 2 * len(dims))
    for li, (fan_in, fan_out) in enumerate(dims, start=1):
        bound = 1.0 / (fan_in ** 0.5)
        wk, bk = keys[2 * (li - 1)], keys[2 * (li - 1) + 1]
        # stored as (in, out) so the kernel does x @ W
        params[f"w{li}"] = jax.random.uniform(
            wk, (fan_in, fan_out), jnp.float32, minval=-bound, maxval=bound)
        params[f"b{li}"] = jax.random.uniform(
            bk, (1, fan_out), jnp.float32, minval=-bound, maxval=bound)
    return params


def dqn_reference(state, params):
    """Plain-JAX reference mirroring the kernel's bf16-MXU / f32-accumulate path."""
    def lin(a, w, b):
        return jnp.dot(a.astype(jnp.bfloat16), w.astype(jnp.bfloat16),
                       preferred_element_type=jnp.float32) + b
    h = jnp.maximum(lin(state, params["w1"], params["b1"]), 0.0)
    h = jnp.maximum(lin(h, params["w2"], params["b2"]), 0.0)
    h = jnp.maximum(lin(h, params["w3"], params["b3"]), 0.0)
    return lin(h, params["w4"], params["b4"])


def dqn_reference_f32(state, params):
    """Pure f32 reference (PyTorch-equivalent numerics)."""
    h = jnp.maximum(state @ params["w1"] + params["b1"], 0.0)
    h = jnp.maximum(h @ params["w2"] + params["b2"], 0.0)
    h = jnp.maximum(h @ params["w3"] + params["b3"], 0.0)
    return h @ params["w4"] + params["b4"]


if __name__ == "__main__":
    key = jax.random.PRNGKey(0)
    k_param, k_state, k_state2 = jax.random.split(key, 3)

    batch = 8
    state_size = 16
    action_size = 8
    hidden_size = 32

    params = init_dqn_params(k_param, state_size, action_size, hidden_size)
    padded, meta = prepare_params(params)      # one-time pad+cast (hoisted)

    state = jax.random.normal(k_state, (batch, state_size), jnp.float32)
    q_values = jax.block_until_ready(dqn_forward(state, padded, meta))

    assert q_values.shape == (batch, action_size)
    assert q_values.dtype == jnp.bfloat16
    q32 = q_values.astype(jnp.float32)

    # tight check vs a reference mirroring the bf16-in / f32-accumulate math
    q_ref_bf16 = dqn_reference(state, params)
    assert jnp.allclose(q32, q_ref_bf16, atol=2e-2, rtol=2e-2)

    # loose check vs the pure-f32 (PyTorch-equivalent) reference
    q_ref_f32 = dqn_reference_f32(state, params)
    assert jnp.allclose(q32, q_ref_f32, atol=6e-2, rtol=6e-2)

    # multi-tile path: explicit batch_tile forces a multi-step "parallel" grid,
    # exercising batch padding + resident-weight revisit across grid steps.
    state2 = jax.random.normal(k_state2, (600, state_size), jnp.float32)
    q2 = jax.block_until_ready(dqn_forward(state2, padded, meta, batch_tile=256))
    assert q2.shape == (600, action_size)
    assert jnp.allclose(q2.astype(jnp.float32), dqn_reference_f32(state2, params),
                        atol=6e-2, rtol=6e-2)

    print("KERNEL_OK")
</pallas_src>

<mosaic_0001>
module attributes {stable_mosaic.version = 11 : i64} {
  func.func @dqn_kernel(%arg0: i32, %arg1: memref<16x16xf32, #tpu.memory_space<vmem>>, %arg2: memref<16x128xbf16, #tpu.memory_space<vmem>>, %arg3: memref<1x128xf32, #tpu.memory_space<vmem>>, %arg4: memref<128x128xbf16, #tpu.memory_space<vmem>>, %arg5: memref<1x128xf32, #tpu.memory_space<vmem>>, %arg6: memref<128x128xbf16, #tpu.memory_space<vmem>>, %arg7: memref<1x128xf32, #tpu.memory_space<vmem>>, %arg8: memref<128x128xbf16, #tpu.memory_space<vmem>>, %arg9: memref<1x128xf32, #tpu.memory_space<vmem>>, %arg10: memref<16x128xbf16, #tpu.memory_space<vmem>>) attributes {dimension_semantics = [#tpu.dimension_semantics<parallel>], iteration_bounds = array<i64: 1>, scalar_prefetch = 0 : i64, scratch_operands = 0 : i64, tpu.core_type = #tpu.core_type<tc>, window_params = [{transform_indices = @transform_0, window_bounds = array<i64: 16, 16>}, {pipeline_mode = #tpu.pipeline_mode<synchronous>, transform_indices = @transform_1, window_bounds = array<i64: 16, 128>}, {pipeline_mode = #tpu.pipeline_mode<synchronous>, transform_indices = @transform_2, window_bounds = array<i64: 1, 128>}, {pipeline_mode = #tpu.pipeline_mode<synchronous>, transform_indices = @transform_3, window_bounds = array<i64: 128, 128>}, {pipeline_mode = #tpu.pipeline_mode<synchronous>, transform_indices = @transform_4, window_bounds = array<i64: 1, 128>}, {pipeline_mode = #tpu.pipeline_mode<synchronous>, transform_indices = @transform_5, window_bounds = array<i64: 128, 128>}, {pipeline_mode = #tpu.pipeline_mode<synchronous>, transform_indices = @transform_6, window_bounds = array<i64: 1, 128>}, {pipeline_mode = #tpu.pipeline_mode<synchronous>, transform_indices = @transform_7, window_bounds = array<i64: 128, 128>}, {pipeline_mode = #tpu.pipeline_mode<synchronous>, transform_indices = @transform_8, window_bounds = array<i64: 1, 128>}, {transform_indices = @transform_9, window_bounds = array<i64: 16, 128>}]} {
    %c0 = arith.constant 0 : index
    %c0_0 = arith.constant 0 : index
    %0 = vector.load %arg1[%c0, %c0_0] : memref<16x16xf32, #tpu.memory_space<vmem>>, vector<16x16xf32>
    %1 = arith.truncf %0 : vector<16x16xf32> to vector<16x16xbf16>
    %c0_1 = arith.constant 0 : index
    %c0_2 = arith.constant 0 : index
    %2 = vector.load %arg2[%c0_1, %c0_2] : memref<16x128xbf16, #tpu.memory_space<vmem>>, vector<16x128xbf16>
    %cst = arith.constant dense<0.000000e+00> : vector<16x128xf32>
    %3 = tpu.matmul %1, %2, %cst {dimension_numbers = #tpu.dot_dimension_numbers<[1], [0], [0], [1], [0, 0, 1, 1], [], []>} : vector<16x16xbf16>, vector<16x128xbf16>, vector<16x128xf32> -> vector<16x128xf32>
    %c0_3 = arith.constant 0 : index
    %c0_4 = arith.constant 0 : index
    %4 = vector.load %arg3[%c0_3, %c0_4] : memref<1x128xf32, #tpu.memory_space<vmem>>, vector<1x128xf32>
    %5 = vector.broadcast %4 : vector<1x128xf32> to vector<16x128xf32>
    %6 = arith.addf %3, %5 : vector<16x128xf32>
    %cst_5 = arith.constant 0.000000e+00 : f32
    %7 = vector.broadcast %cst_5 : f32 to vector<16x128xf32>
    %8 = arith.maximumf %6, %7 : vector<16x128xf32>
    %9 = arith.truncf %8 : vector<16x128xf32> to vector<16x128xbf16>
    %c0_6 = arith.constant 0 : index
    %c0_7 = arith.constant 0 : index
    %10 = vector.load %arg4[%c0_6, %c0_7] : memref<128x128xbf16, #tpu.memory_space<vmem>>, vector<128x128xbf16>
    %cst_8 = arith.constant dense<0.000000e+00> : vector<16x128xf32>
    %11 = tpu.matmul %9, %10, %cst_8 {dimension_numbers = #tpu.dot_dimension_numbers<[1], [0], [0], [1], [0, 0, 1, 1], [], []>} : vector<16x128xbf16>, vector<128x128xbf16>, vector<16x128xf32> -> vector<16x128xf32>
    %c0_9 = arith.constant 0 : index
    %c0_10 = arith.constant 0 : index
    %12 = vector.load %arg5[%c0_9, %c0_10] : memref<1x128xf32, #tpu.memory_space<vmem>>, vector<1x128xf32>
    %13 = vector.broadcast %12 : vector<1x128xf32> to vector<16x128xf32>
    %14 = arith.addf %11, %13 : vector<16x128xf32>
    %cst_11 = arith.constant 0.000000e+00 : f32
    %15 = vector.broadcast %cst_11 : f32 to vector<16x128xf32>
    %16 = arith.maximumf %14, %15 : vector<16x128xf32>
    %17 = arith.truncf %16 : vector<16x128xf32> to vector<16x128xbf16>
    %c0_12 = arith.constant 0 : index
    %c0_13 = arith.constant 0 : index
    %18 = vector.load %arg6[%c0_12, %c0_13] : memref<128x128xbf16, #tpu.memory_space<vmem>>, vector<128x128xbf16>
    %cst_14 = arith.constant dense<0.000000e+00> : vector<16x128xf32>
    %19 = tpu.matmul %17, %18, %cst_14 {dimension_numbers = #tpu.dot_dimension_numbers<[1], [0], [0], [1], [0, 0, 1, 1], [], []>} : vector<16x128xbf16>, vector<128x128xbf16>, vector<16x128xf32> -> vector<16x128xf32>
    %c0_15 = arith.constant 0 : index
    %c0_16 = arith.constant 0 : index
    %20 = vector.load %arg7[%c0_15, %c0_16] : memref<1x128xf32, #tpu.memory_space<vmem>>, vector<1x128xf32>
    %21 = vector.broadcast %20 : vector<1x128xf32> to vector<16x128xf32>
    %22 = arith.addf %19, %21 : vector<16x128xf32>
    %cst_17 = arith.constant 0.000000e+00 : f32
    %23 = vector.broadcast %cst_17 : f32 to vector<16x128xf32>
    %24 = arith.maximumf %22, %23 : vector<16x128xf32>
    %25 = arith.truncf %24 : vector<16x128xf32> to vector<16x128xbf16>
    %c0_18 = arith.constant 0 : index
    %c0_19 = arith.constant 0 : index
    %26 = vector.load %arg8[%c0_18, %c0_19] : memref<128x128xbf16, #tpu.memory_space<vmem>>, vector<128x128xbf16>
    %cst_20 = arith.constant dense<0.000000e+00> : vector<16x128xf32>
    %27 = tpu.matmul %25, %26, %cst_20 {dimension_numbers = #tpu.dot_dimension_numbers<[1], [0], [0], [1], [0, 0, 1, 1], [], []>} : vector<16x128xbf16>, vector<128x128xbf16>, vector<16x128xf32> -> vector<16x128xf32>
    %c0_21 = arith.constant 0 : index
    %c0_22 = arith.constant 0 : index
    %28 = vector.load %arg9[%c0_21, %c0_22] : memref<1x128xf32, #tpu.memory_space<vmem>>, vector<1x128xf32>
    %29 = vector.broadcast %28 : vector<1x128xf32> to vector<16x128xf32>
    %30 = arith.addf %27, %29 : vector<16x128xf32>
    %31 = arith.truncf %30 : vector<16x128xf32> to vector<16x128xbf16>
    %c0_23 = arith.constant 0 : index
    %c0_24 = arith.constant 0 : index
    %32 = vector.load %arg10[%c0_23, %c0_24] : memref<16x128xbf16, #tpu.memory_space<vmem>>, vector<16x128xbf16>
    tpu.vector_store %arg10[%c0_23, %c0_24], %31 {strides = array<i32>} : memref<16x128xbf16, #tpu.memory_space<vmem>>, vector<16x128xbf16>,
    return
  }
  func.func @transform_0(%arg0: i32) -> (i32, i32) {
    %c0_i32 = arith.constant 0 : i32
    %c0_i32_0 = arith.constant 0 : i32
    return %arg0, %c0_i32 : i32, i32
  }
  func.func @transform_1(%arg0: i32) -> (i32, i32) {
    %c0_i32 = arith.constant 0 : i32
    %c0_i32_0 = arith.constant 0 : i32
    %c0_i32_1 = arith.constant 0 : i32
    return %c0_i32, %c0_i32_0 : i32, i32
  }
  func.func @transform_2(%arg0: i32) -> (i32, i32) {
    %c0_i32 = arith.constant 0 : i32
    %c0_i32_0 = arith.constant 0 : i32
    %c0_i32_1 = arith.constant 0 : i32
    return %c0_i32, %c0_i32_0 : i32, i32
  }
  func.func @transform_3(%arg0: i32) -> (i32, i32) {
    %c0_i32 = arith.constant 0 : i32
    %c0_i32_0 = arith.constant 0 : i32
    %c0_i32_1 = arith.constant 0 : i32
    return %c0_i32, %c0_i32_0 : i32, i32
  }
  func.func @transform_4(%arg0: i32) -> (i32, i32) {
    %c0_i32 = arith.constant 0 : i32
    %c0_i32_0 = arith.constant 0 : i32
    %c0_i32_1 = arith.constant 0 : i32
    return %c0_i32, %c0_i32_0 : i32, i32
  }
  func.func @transform_5(%arg0: i32) -> (i32, i32) {
    %c0_i32 = arith.constant 0 : i32
    %c0_i32_0 = arith.constant 0 : i32
    %c0_i32_1 = arith.constant 0 : i32
    return %c0_i32, %c0_i32_0 : i32, i32
  }
  func.func @transform_6(%arg0: i32) -> (i32, i32) {
    %c0_i32 = arith.constant 0 : i32
    %c0_i32_0 = arith.constant 0 : i32
    %c0_i32_1 = arith.constant 0 : i32
    return %c0_i32, %c0_i32_0 : i32, i32
  }
  func.func @transform_7(%arg0: i32) -> (i32, i32) {
    %c0_i32 = arith.constant 0 : i32
    %c0_i32_0 = arith.constant 0 : i32
    %c0_i32_1 = arith.constant 0 : i32
    return %c0_i32, %c0_i32_0 : i32, i32
  }
  func.func @transform_8(%arg0: i32) -> (i32, i32) {
    %c0_i32 = arith.constant 0 : i32
    %c0_i32_0 = arith.constant 0 : i32
    %c0_i32_1 = arith.constant 0 : i32
    return %c0_i32, %c0_i32_0 : i32, i32
  }
  func.func @transform_9(%arg0: i32) -> (i32, i32) {
    %c0_i32 = arith.constant 0 : i32
    %c0_i32_0 = arith.constant 0 : i32
    return %arg0, %c0_i32 : i32, i32
  }
}

module attributes {stable_mosaic.version = 11 : i64} {
  func.func @dqn_kernel(%arg0: i32, %arg1: memref<16x16xf32, #tpu.memory_space<vmem>>, %arg2: memref<16x128xbf16, #tpu.memory_space<vmem>>, %arg3: memref<1x128xf32, #tpu.memory_space<vmem>>, %arg4: memref<128x128xbf16, #tpu.memory_space<vmem>>, %arg5: memref<1x128xf32, #tpu.memory_space<vmem>>, %arg6: memref<128x128xbf16, #tpu.memory_space<vmem>>, %arg7: memref<1x128xf32, #tpu.memory_space<vmem>>, %arg8: memref<128x128xbf16, #tpu.memory_space<vmem>>, %arg9: memref<1x128xf32, #tpu.memory_space<vmem>>, %arg10: memref<16x128xbf16, #tpu.memory_space<vmem>>) attributes {dimension_semantics = [#tpu.dimension_semantics<parallel>], iteration_bounds = array<i64: 1>, scalar_prefetch = 0 : i64, scratch_operands = 0 : i64, tpu.core_type = #tpu.core_type<tc>, window_params = [{transform_indices = @transform_0, window_bounds = array<i64: 16, 16>}, {pipeline_mode = #tpu.pipeline_mode<synchronous>, transform_indices = @transform_1, window_bounds = array<i64: 16, 128>}, {pipeline_mode = #tpu.pipeline_mode<synchronous>, transform_indices = @transform_2, window_bounds = array<i64: 1, 128>}, {pipeline_mode = #tpu.pipeline_mode<synchronous>, transform_indices = @transform_3, window_bounds = array<i64: 128, 128>}, {pipeline_mode = #tpu.pipeline_mode<synchronous>, transform_indices = @transform_4, window_bounds = array<i64: 1, 128>}, {pipeline_mode = #tpu.pipeline_mode<synchronous>, transform_indices = @transform_5, window_bounds = array<i64: 128, 128>}, {pipeline_mode = #tpu.pipeline_mode<synchronous>, transform_indices = @transform_6, window_bounds = array<i64: 1, 128>}, {pipeline_mode = #tpu.pipeline_mode<synchronous>, transform_indices = @transform_7, window_bounds = array<i64: 128, 128>}, {pipeline_mode = #tpu.pipeline_mode<synchronous>, transform_indices = @transform_8, window_bounds = array<i64: 1, 128>}, {transform_indices = @transform_9, window_bounds = array<i64: 16, 128>}]} {
    %c0 = arith.constant 0 : index
    %c0_0 = arith.constant 0 : index
    %0 = vector.load %arg1[%c0, %c0_0] : memref<16x16xf32, #tpu.memory_space<vmem>>, vector<16x16xf32>
    %1 = arith.truncf %0 : vector<16x16xf32> to vector<16x16xbf16>
    %c0_1 = arith.constant 0 : index
    %c0_2 = arith.constant 0 : index
    %2 = vector.load %arg2[%c0_1, %c0_2] : memref<16x128xbf16, #tpu.memory_space<vmem>>, vector<16x128xbf16>
    %cst = arith.constant dense<0.000000e+00> : vector<16x128xf32>
    %3 = tpu.matmul %1, %2, %cst {dimension_numbers = #tpu.dot_dimension_numbers<[1], [0], [0], [1], [0, 0, 1, 1], [], []>} : vector<16x16xbf16>, vector<16x128xbf16>, vector<16x128xf32> -> vector<16x128xf32>
    %c0_3 = arith.constant 0 : index
    %c0_4 = arith.constant 0 : index
    %4 = vector.load %arg3[%c0_3, %c0_4] : memref<1x128xf32, #tpu.memory_space<vmem>>, vector<1x128xf32>
    %5 = vector.broadcast %4 : vector<1x128xf32> to vector<16x128xf32>
    %6 = arith.addf %3, %5 : vector<16x128xf32>
    %cst_5 = arith.constant 0.000000e+00 : f32
    %7 = vector.broadcast %cst_5 : f32 to vector<16x128xf32>
    %8 = arith.maximumf %6, %7 : vector<16x128xf32>
    %9 = arith.truncf %8 : vector<16x128xf32> to vector<16x128xbf16>
    %c0_6 = arith.constant 0 : index
    %c0_7 = arith.constant 0 : index
    %10 = vector.load %arg4[%c0_6, %c0_7] : memref<128x128xbf16, #tpu.memory_space<vmem>>, vector<128x128xbf16>
    %cst_8 = arith.constant dense<0.000000e+00> : vector<16x128xf32>
    %11 = tpu.matmul %9, %10, %cst_8 {dimension_numbers = #tpu.dot_dimension_numbers<[1], [0], [0], [1], [0, 0, 1, 1], [], []>} : vector<16x128xbf16>, vector<128x128xbf16>, vector<16x128xf32> -> vector<16x128xf32>
    %c0_9 = arith.constant 0 : index
    %c0_10 = arith.constant 0 : index
    %12 = vector.load %arg5[%c0_9, %c0_10] : memref<1x128xf32, #tpu.memory_space<vmem>>, vector<1x128xf32>
    %13 = vector.broadcast %12 : vector<1x128xf32> to vector<16x128xf32>
    %14 = arith.addf %11, %13 : vector<16x128xf32>
    %cst_11 = arith.constant 0.000000e+00 : f32
    %15 = vector.broadcast %cst_11 : f32 to vector<16x128xf32>
    %16 = arith.maximumf %14, %15 : vector<16x128xf32>
    %17 = arith.truncf %16 : vector<16x128xf32> to vector<16x128xbf16>
    %c0_12 = arith.constant 0 : index
    %c0_13 = arith.constant 0 : index
    %18 = vector.load %arg6[%c0_12, %c0_13] : memref<128x128xbf16, #tpu.memory_space<vmem>>, vector<128x128xbf16>
    %cst_14 = arith.constant dense<0.000000e+00> : vector<16x128xf32>
    %19 = tpu.matmul %17, %18, %cst_14 {dimension_numbers = #tpu.dot_dimension_numbers<[1], [0], [0], [1], [0, 0, 1, 1], [], []>} : vector<16x128xbf16>, vector<128x128xbf16>, vector<16x128xf32> -> vector<16x128xf32>
    %c0_15 = arith.constant 0 : index
    %c0_16 = arith.constant 0 : index
    %20 = vector.load %arg7[%c0_15, %c0_16] : memref<1x128xf32, #tpu.memory_space<vmem>>, vector<1x128xf32>
    %21 = vector.broadcast %20 : vector<1x128xf32> to vector<16x128xf32>
    %22 = arith.addf %19, %21 : vector<16x128xf32>
    %cst_17 = arith.constant 0.000000e+00 : f32
    %23 = vector.broadcast %cst_17 : f32 to vector<16x128xf32>
    %24 = arith.maximumf %22, %23 : vector<16x128xf32>
    %25 = arith.truncf %24 : vector<16x128xf32> to vector<16x128xbf16>
    %c0_18 = arith.constant 0 : index
    %c0_19 = arith.constant 0 : index
    %26 = vector.load %arg8[%c0_18, %c0_19] : memref<128x128xbf16, #tpu.memory_space<vmem>>, vector<128x128xbf16>
    %cst_20 = arith.constant dense<0.000000e+00> : vector<16x128xf32>
    %27 = tpu.matmul %25, %26, %cst_20 {dimension_numbers = #tpu.dot_dimension_numbers<[1], [0], [0], [1], [0, 0, 1, 1], [], []>} : vector<16x128xbf16>, vector<128x128xbf16>, vector<16x128xf32> -> vector<16x128xf32>
    %c0_21 = arith.constant 0 : index
    %c0_22 = arith.constant 0 : index
    %28 = vector.load %arg9[%c0_21, %c0_22] : memref<1x128xf32, #tpu.memory_space<vmem>>, vector<1x128xf32>
    %29 = vector.broadcast %28 : vector<1x128xf32> to vector<16x128xf32>
    %30 = arith.addf %27, %29 : vector<16x128xf32>
    %31 = arith.truncf %30 : vector<16x128xf32> to vector<16x128xbf16>
    %c0_23 = arith.constant 0 : index
    %c0_24 = arith.constant 0 : index
    %32 = vector.load %arg10[%c0_23, %c0_24] : memref<16x128xbf16, #tpu.memory_space<vmem>>, vector<16x128xbf16>
    tpu.vector_store %arg10[%c0_23, %c0_24], %31 {strides = array<i32>} : memref<16x128xbf16, #tpu.memory_space<vmem>>, vector<16x128xbf16>,
    return
  }
  func.func @transform_0(%arg0: i32) -> (i32, i32) {
    %c0_i32 = arith.constant 0 : i32
    %c0_i32_0 = arith.constant 0 : i32
    return %arg0, %c0_i32 : i32, i32
  }
  func.func @transform_1(%arg0: i32) -> (i32, i32) {
    %c0_i32 = arith.constant 0 : i32
    %c0_i32_0 = arith.constant 0 : i32
    %c0_i32_1 = arith.constant 0 : i32
    return %c0_i32, %c0_i32_0 : i32, i32
  }
  func.func @transform_2(%arg0: i32) -> (i32, i32) {
    %c0_i32 = arith.constant 0 : i32
    %c0_i32_0 = arith.constant 0 : i32
    %c0_i32_1 = arith.constant 0 : i32
    return %c0_i32, %c0_i32_0 : i32, i32
  }
  func.func @transform_3(%arg0: i32) -> (i32, i32) {
    %c0_i32 = arith.constant 0 : i32
    %c0_i32_0 = arith.constant 0 : i32
    %c0_i32_1 = arith.constant 0 : i32
    return %c0_i32, %c0_i32_0 : i32, i32
  }
  func.func @transform_4(%arg0: i32) -> (i32, i32) {
    %c0_i32 = arith.constant 0 : i32
    %c0_i32_0 = arith.constant 0 : i32
    %c0_i32_1 = arith.constant 0 : i32
    return %c0_i32, %c0_i32_0 : i32, i32
  }
  func.func @transform_5(%arg0: i32) -> (i32, i32) {
    %c0_i32 = arith.constant 0 : i32
    %c0_i32_0 = arith.constant 0 : i32
    %c0_i32_1 = arith.constant 0 : i32
    return %c0_i32, %c0_i32_0 : i32, i32
  }
  func.func @transform_6(%arg0: i32) -> (i32, i32) {
    %c0_i32 = arith.constant 0 : i32
    %c0_i32_0 = arith.constant 0 : i32
    %c0_i32_1 = arith.constant 0 : i32
    return %c0_i32, %c0_i32_0 : i32, i32
  }
  func.func @transform_7(%arg0: i32) -> (i32, i32) {
    %c0_i32 = arith.constant 0 : i32
    %c0_i32_0 = arith.constant 0 : i32
    %c0_i32_1 = arith.constant 0 : i32
    return %c0_i32, %c0_i32_0 : i32, i32
  }
  func.func @transform_8(%arg0: i32) -> (i32, i32) {
    %c0_i32 = arith.constant 0 : i32
    %c0_i32_0 = arith.constant 0 : i32
    %c0_i32_1 = arith.constant 0 : i32
    return %c0_i32, %c0_i32_0 : i32, i32
  }
  func.func @transform_9(%arg0: i32) -> (i32, i32) {
    %c0_i32 = arith.constant 0 : i32
    %c0_i32_0 = arith.constant 0 : i32
    return %arg0, %c0_i32 : i32, i32
  }
}

</mosaic_0001>

<llo_original>
// kernel: tpu_custom_call.1
$region0: #{tpu_custom_call.1}
  #allocation0 [shape = 'u32[]', space=smem, size = 0x4, offset = 0x4, fixed_abs, tag = 'smem constant byte address 0x4 - core index']
  #allocation1 [shape = 'u32[144,128]{1,0:T(1,128)}', space=vmem, size = 0x12000, scoped, tag = 'internal scratch']
  %s0 = inlined_call_operand.hbm [shape: f32[16,16], index: 0, kind: input, shape index: {}]
  %s1 = inlined_call_operand.hbm [shape: bf16[16,128], index: 1, kind: input, shape index: {}]
  %s2 = inlined_call_operand.vmem [shape: f32[1,128], index: 2, kind: input, shape index: {}]
  %s3 = inlined_call_operand.hbm [shape: bf16[128,128], index: 3, kind: input, shape index: {}]
  %s4 = inlined_call_operand.vmem [shape: f32[1,128], index: 4, kind: input, shape index: {}]
  %s5 = inlined_call_operand.hbm [shape: bf16[128,128], index: 5, kind: input, shape index: {}]
  %s6 = inlined_call_operand.vmem [shape: f32[1,128], index: 6, kind: input, shape index: {}]
  %s7 = inlined_call_operand.hbm [shape: bf16[128,128], index: 7, kind: input, shape index: {}]
  %s8 = inlined_call_operand.vmem [shape: f32[1,128], index: 8, kind: input, shape index: {}]
  %s9 = inlined_call_operand.hbm [shape: bf16[16,128], index: 9, kind: output, shape index: {}]
  %s10 = sld [smem:[#allocation0]]
  $region66: #{tpu_custom_call.1} parent=0
    _
  %s12 = ssub.s32 1, %s10
  %s13 = scalar_select 0, %s12, %s10
  $region1: #{tpu_custom_call.1} parent=0
    #allocation2 [shape = 'u8[8192]{0}', space=vmem, size = 0x2000, scoped, tag = 'input window, operand 0, single buffered']
    #allocation3 [shape = 's32[1]{0}', space=sflag, size = 0x4, scoped, tag = 'scoped memory for tpu_custom_call.1']
    #allocation4 [shape = 's32[1]{0}', space=sflag, size = 0x4, scoped, tag = 'scoped memory for tpu_custom_call.1']
    #allocation5 [shape = 'u8[4096]{0}', space=vmem, size = 0x1000, scoped, tag = 'input window, operand 1, single buffered']
    #allocation6 [shape = 's32[1]{0}', space=sflag, size = 0x4, scoped, tag = 'scoped memory for tpu_custom_call.1']
    #allocation7 [shape = 'u8[32768]{0}', space=vmem, size = 0x8000, scoped, tag = 'input window, operand 3, single buffered']
    #allocation8 [shape = 'u8[32768]{0}', space=vmem, size = 0x8000, scoped, tag = 'input window, operand 5, single buffered']
    #allocation9 [shape = 's32[1]{0}', space=sflag, size = 0x4, scoped, tag = 'scoped memory for tpu_custom_call.1']
    #allocation10 [shape = 'u8[32768]{0}', space=vmem, size = 0x8000, scoped, tag = 'input window, operand 7, single buffered']
    #allocation11 [shape = 'u8[4096]{0}', space=vmem, size = 0x1000, scoped, tag = 'output window, operand 0, single buffered']
    %14 = vsyncpa [#allocation3], 0
    %15 = vsyncpa [#allocation6], 0
    %16 = vsyncpa [#allocation9], 0
    %17 = vsyncpa [#allocation4], 0
    // Predicated region
    $region2: #{tpu_custom_call.1} parent=1 // pred_check
      _
    $region3: #{tpu_custom_call.1} parent=1 // pred_check_branch
      %19 = sbr.rel (0) target = $region5
    $region4: #{tpu_custom_call.1} parent=1 // pred_region
      %s21 = ssub.s32 256, 256
      %22 = vsyncadd [#allocation3], %s21
      %s23 = sshll.u32 [#allocation2], 4
      %s24 = int_to_ptr.vmem [resolvable:$true] %s23
      %29 = dma.hbm_to_vmem [thread:$0]  %s0, 256, %s24, [#allocation3], 128, 128, 8
    $region5: #{tpu_custom_call.1} parent=1 // pred_fallthru
      _
    // Predicated region
    $region6: #{tpu_custom_call.1} parent=1 // pred_check
      _
    $region7: #{tpu_custom_call.1} parent=1 // pred_check_branch
      %31 = sbr.rel (0) target = $region9
    $region8: #{tpu_custom_call.1} parent=1 // pred_region
      %s33 = ssub.s32 128, 128
      %34 = vsyncadd [#allocation6], %s33
      %s35 = sshll.u32 [#allocation5], 4
      %s36 = int_to_ptr.vmem [resolvable:$true] %s35
      %41 = dma.hbm_to_vmem [thread:$0]  %s1, 128, %s36, [#allocation6], 64, 64, 4
    $region9: #{tpu_custom_call.1} parent=1 // pred_fallthru
      _
    // Predicated region
    $region10: #{tpu_custom_call.1} parent=1 // pred_check
      _
    $region11: #{tpu_custom_call.1} parent=1 // pred_check_branch
      %43 = sbr.rel (0) target = $region13
    $region12: #{tpu_custom_call.1} parent=1 // pred_region
      _
    $region13: #{tpu_custom_call.1} parent=1 // pred_fallthru
      _
    // Predicated region
    $region14: #{tpu_custom_call.1} parent=1 // pred_check
      _
    $region15: #{tpu_custom_call.1} parent=1 // pred_check_branch
      %45 = sbr.rel (0) target = $region17
    $region16: #{tpu_custom_call.1} parent=1 // pred_region
      %s47 = ssub.s32 1024, 1024
      %48 = vsyncadd [#allocation6], %s47
      %s49 = sshll.u32 [#allocation7], 4
      %s50 = int_to_ptr.vmem [resolvable:$true] %s49
      %55 = dma.hbm_to_vmem [thread:$0]  %s3, 1024, %s50, [#allocation6], 64, 64, 4
    $region17: #{tpu_custom_call.1} parent=1 // pred_fallthru
      _
    // Predicated region
    $region18: #{tpu_custom_call.1} parent=1 // pred_check
      _
    $region19: #{tpu_custom_call.1} parent=1 // pred_check_branch
      %57 = sbr.rel (0) target = $region21
    $region20: #{tpu_custom_call.1} parent=1 // pred_region
      _
    $region21: #{tpu_custom_call.1} parent=1 // pred_fallthru
      _
    // Predicated region
    $region22: #{tpu_custom_call.1} parent=1 // pred_check
      _
    $region23: #{tpu_custom_call.1} parent=1 // pred_check_branch
      %59 = sbr.rel (0) target = $region25
    $region24: #{tpu_custom_call.1} parent=1 // pred_region
      %s61 = ssub.s32 1024, 1024
      %62 = vsyncadd [#allocation9], %s61
      %s63 = sshll.u32 [#allocation8], 4
      %s64 = int_to_ptr.vmem [resolvable:$true] %s63
      %69 = dma.hbm_to_vmem [thread:$0]  %s5, 1024, %s64, [#allocation9], 64, 64, 4
    $region25: #{tpu_custom_call.1} parent=1 // pred_fallthru
      _
    // Predicated region
    $region26: #{tpu_custom_call.1} parent=1 // pred_check
      _
    $region27: #{tpu_custom_call.1} parent=1 // pred_check_branch
      %71 = sbr.rel (0) target = $region29
    $region28: #{tpu_custom_call.1} parent=1 // pred_region
      _
    $region29: #{tpu_custom_call.1} parent=1 // pred_fallthru
      _
    // Predicated region
    $region30: #{tpu_custom_call.1} parent=1 // pred_check
      _
    $region31: #{tpu_custom_call.1} parent=1 // pred_check_branch
      %73 = sbr.rel (0) target = $region33
    $region32: #{tpu_custom_call.1} parent=1 // pred_region
      %s75 = ssub.s32 1024, 1024
      %76 = vsyncadd [#allocation9], %s75
      %s77 = sshll.u32 [#allocation10], 4
      %s78 = int_to_ptr.vmem [resolvable:$true] %s77
      %83 = dma.hbm_to_vmem [thread:$0]  %s7, 1024, %s78, [#allocation9], 64, 64, 4
    $region33: #{tpu_custom_call.1} parent=1 // pred_fallthru
      _
    // Predicated region
    $region34: #{tpu_custom_call.1} parent=1 // pred_check
      _
    $region35: #{tpu_custom_call.1} parent=1 // pred_check_branch
      %85 = sbr.rel (0) target = $region37
    $region36: #{tpu_custom_call.1} parent=1 // pred_region
      _
    $region37: #{tpu_custom_call.1} parent=1 // pred_fallthru
      _
    // Predicated region
    $region38: #{tpu_custom_call.1} parent=1 // pred_check
      _
    $region39: #{tpu_custom_call.1} parent=1 // pred_check_branch
      %87 = sbr.rel (0) target = $region41
    $region40: #{tpu_custom_call.1} parent=1 // pred_region
      %88 = dma.done [#allocation3], 256
    $region41: #{tpu_custom_call.1} parent=1 // pred_fallthru
      _
    // Predicated region
    $region42: #{tpu_custom_call.1} parent=1 // pred_check
      _
    $region43: #{tpu_custom_call.1} parent=1 // pred_check_branch
      %90 = sbr.rel (0) target = $region45
    $region44: #{tpu_custom_call.1} parent=1 // pred_region
      %91 = dma.done [#allocation6], 128
    $region45: #{tpu_custom_call.1} parent=1 // pred_fallthru
      _
    // Predicated region
    $region46: #{tpu_custom_call.1} parent=1 // pred_check
      _
    $region47: #{tpu_custom_call.1} parent=1 // pred_check_branch
      %93 = sbr.rel (0) target = $region49
    $region48: #{tpu_custom_call.1} parent=1 // pred_region
      %94 = dma.done [#allocation6], 1024
    $region49: #{tpu_custom_call.1} parent=1 // pred_fallthru
      _
    // Predicated region
    $region50: #{tpu_custom_call.1} parent=1 // pred_check
      _
    $region51: #{tpu_custom_call.1} parent=1 // pred_check_branch
      %96 = sbr.rel (0) target = $region53
    $region52: #{tpu_custom_call.1} parent=1 // pred_region
      %97 = dma.done [#allocation9], 1024
    $region53: #{tpu_custom_call.1} parent=1 // pred_fallthru
      _
    // Predicated region
    $region54: #{tpu_custom_call.1} parent=1 // pred_check
      _
    $region55: #{tpu_custom_call.1} parent=1 // pred_check_branch
      %99 = sbr.rel (0) target = $region57
    $region56: #{tpu_custom_call.1} parent=1 // pred_region
      %100 = dma.done [#allocation9], 1024
    $region57: #{tpu_custom_call.1} parent=1 // pred_fallthru
      _
    %v102 = vld [vmem:[#allocation2] sm:$0xff]
    %v103 = vld [vmem:[#allocation2 + $0x8] sm:$0xff]
    %v104 = vpack.c.bf16 %v103, %v102
    %v105 = vld [vmem:[#allocation5] sm:$0xf]
    %v106 = vld [vmem:[#allocation5 + $0x4] sm:$0xf]
    %v107 = vld [vmem:[%s2] sm:$0x1]
    %v109 = vlaneseq
    %v110 = vshrl.u32 %v109, 7
    %v111 = vsub.s32 0, %v110
    %v112 = vrot.slane %v107, %v111
    %v116 = vunpack.c.l.b16 %v105
    %v117 = vunpack.c.l.b16 %v106
    %v118 = vpack.c.b16 %v117, %v116
    %vm120 = vcmask 130048
    %v122 = vsel %vm120, %v104, 0
    %124 = vmatprep.subr.bf16.mxu0 0
    %125 = vmatpush1.bf16.msra.mxu0 %v118
    %126 = vmatprep.subr.bf16.mxu0 0
    %127 = vmatpush1.bf16.msra.mxu0 0
    %128 = vmatprep.subr.bf16.mxu0 0
    %129 = vmatpush1.bf16.msra.mxu0 0
    %130 = vmatprep.subr.bf16.mxu0 0
    %131 = vmatpush1.bf16.msra.mxu0 0
    %132 = vmatprep.subr.bf16.mxu0 0
    %133 = vmatpush1.bf16.msra.mxu0 0
    %134 = vmatprep.subr.bf16.mxu0 0
    %135 = vmatpush1.bf16.msra.mxu0 0
    %136 = vmatprep.subr.bf16.mxu0 0
    %137 = vmatpush1.bf16.msra.mxu0 0
    %138 = vmatprep.subr.bf16.mxu0 0
    %139 = vmatpush1.bf16.msra.mxu0 0
    %140 = vmatprep.subr.bf16.mxu0 0
    %141 = vmatpush1.bf16.msra.mxu0 0
    %142 = vmatprep.subr.bf16.mxu0 0
    %143 = vmatpush1.bf16.msra.mxu0 0
    %144 = vmatprep.subr.bf16.mxu0 0
    %145 = vmatpush1.bf16.msra.mxu0 0
    %146 = vmatprep.subr.bf16.mxu0 0
    %147 = vmatpush1.bf16.msra.mxu0 0
    %148 = vmatprep.subr.bf16.mxu0 0
    %149 = vmatpush1.bf16.msra.mxu0 0
    %150 = vmatprep.subr.bf16.mxu0 0
    %151 = vmatpush1.bf16.msra.mxu0 0
    %152 = vmatprep.subr.bf16.mxu0 0
    %153 = vmatpush1.bf16.msra.mxu0 0
    %154 = vmatprep.subr.bf16.mxu0 0
    %155 = vmatpush1.bf16.msra.mxu0 0
    %156 = vmatprep.mubr.bf16.mxu0 0
    %157 = vmatmul.mubr.bf16.gmra.mrb[0].mxu0 %v122
    %v158 = vpop.f32.mrb[0].mxu0
    %v159 = vadd.f32 %v112, %v158
    %v160 = vpop.f32.mrb[0].mxu0
    %v161 = vpop.f32.mrb[0].mxu0
    %v162 = vadd.f32 %v112, %v161
    %v163 = vpop.f32.mrb[0].mxu0
    %164 = vdwg.mxu0
    %v165 = vmax.f32 %v159, 0.0
    %v166 = vmax.f32 %v162, 0.0
    %v167 = vpack.c.bf16 %v166, %v165
    %v168 = vld [vmem:[#allocation7] sm:$0xf]
    %v169 = vld [vmem:[#allocation7 + $0x4] sm:$0xf]
    %v170 = vld [vmem:[#allocation7 + $0x8] sm:$0xf]
    %v171 = vld [vmem:[#allocation7 + $0xc] sm:$0xf]
    %v172 = vld [vmem:[#allocation7 + $0x10] sm:$0xf]
    %v173 = vld [vmem:[#allocation7 + $0x14] sm:$0xf]
    %v174 = vld [vmem:[#allocation7 + $0x18] sm:$0xf]
    %v175 = vld [vmem:[#allocation7 + $0x1c] sm:$0xf]
    %v176 = vld [vmem:[#allocation7 + $0x20] sm:$0xf]
    %v177 = vld [vmem:[#allocation7 + $0x24] sm:$0xf]
    %v178 = vld [vmem:[#allocation7 + $0x28] sm:$0xf]
    %v179 = vld [vmem:[#allocation7 + $0x2c] sm:$0xf]
    %v180 = vld [vmem:[#allocation7 + $0x30] sm:$0xf]
    %v181 = vld [vmem:[#allocation7 + $0x34] sm:$0xf]
    %v182 = vld [vmem:[#allocation7 + $0x38] sm:$0xf]
    %v183 = vld [vmem:[#allocation7 + $0x3c] sm:$0xf]
    %v184 = vld [vmem:[%s4] sm:$0x1]
    %v186 = vlaneseq
    %v187 = vshrl.u32 %v186, 7
    %v188 = vsub.s32 0, %v187
    %v189 = vrot.slane %v184, %v188
    %v207 = vunpack.c.l.b16 %v168
    %v208 = vunpack.c.l.b16 %v169
    %v209 = vunpack.c.l.b16 %v170
    %v210 = vunpack.c.l.b16 %v171
    %v211 = vunpack.c.l.b16 %v172
    %v212 = vunpack.c.l.b16 %v173
    %v213 = vunpack.c.l.b16 %v174
    %v214 = vunpack.c.l.b16 %v175
    %v215 = vunpack.c.l.b16 %v176
    %v216 = vunpack.c.l.b16 %v177
    %v217 = vunpack.c.l.b16 %v178
    %v218 = vunpack.c.l.b16 %v179
    %v219 = vunpack.c.l.b16 %v180
    %v220 = vunpack.c.l.b16 %v181
    %v221 = vunpack.c.l.b16 %v182
    %v222 = vunpack.c.l.b16 %v183
    %v223 = vpack.c.b16 %v208, %v207
    %v224 = vpack.c.b16 %v210, %v209
    %v225 = vpack.c.b16 %v212, %v211
    %v226 = vpack.c.b16 %v214, %v213
    %v227 = vpack.c.b16 %v216, %v215
    %v228 = vpack.c.b16 %v218, %v217
    %v229 = vpack.c.b16 %v220, %v219
    %v230 = vpack.c.b16 %v222, %v221
    %239 = vmatprep.subr.bf16.mxu0 0
    %240 = vmatpush1.bf16.msra.mxu0 %v223
    %241 = vmatprep.subr.bf16.mxu0 0
    %242 = vmatpush1.bf16.msra.mxu0 %v224
    %243 = vmatprep.subr.bf16.mxu0 0
    %244 = vmatpush1.bf16.msra.mxu0 %v225
    %245 = vmatprep.subr.bf16.mxu0 0
    %246 = vmatpush1.bf16.msra.mxu0 %v226
    %247 = vmatprep.subr.bf16.mxu0 0
    %248 = vmatpush1.bf16.msra.mxu0 %v227
    %249 = vmatprep.subr.bf16.mxu0 0
    %250 = vmatpush1.bf16.msra.mxu0 %v228
    %251 = vmatprep.subr.bf16.mxu0 0
    %252 = vmatpush1.bf16.msra.mxu0 %v229
    %253 = vmatprep.subr.bf16.mxu0 0
    %254 = vmatpush1.bf16.msra.mxu0 %v230
    %255 = vmatprep.subr.bf16.mxu0 0
    %256 = vmatpush1.bf16.msra.mxu0 0
    %257 = vmatprep.subr.bf16.mxu0 0
    %258 = vmatpush1.bf16.msra.mxu0 0
    %259 = vmatprep.subr.bf16.mxu0 0
    %260 = vmatpush1.bf16.msra.mxu0 0
    %261 = vmatprep.subr.bf16.mxu0 0
    %262 = vmatpush1.bf16.msra.mxu0 0
    %263 = vmatprep.subr.bf16.mxu0 0
    %264 = vmatpush1.bf16.msra.mxu0 0
    %265 = vmatprep.subr.bf16.mxu0 0
    %266 = vmatpush1.bf16.msra.mxu0 0
    %267 = vmatprep.subr.bf16.mxu0 0
    %268 = vmatpush1.bf16.msra.mxu0 0
    %269 = vmatprep.subr.bf16.mxu0 0
    %270 = vmatpush1.bf16.msra.mxu0 0
    %271 = vmatprep.mubr.bf16.mxu0 0
    %272 = vmatmul.mubr.bf16.gmra.mrb[0].mxu0 %v167
    %v273 = vpop.f32.mrb[0].mxu0
    %v274 = vadd.f32 %v189, %v273
    %v275 = vpop.f32.mrb[0].mxu0
    %v276 = vpop.f32.mrb[0].mxu0
    %v277 = vadd.f32 %v189, %v276
    %v278 = vpop.f32.mrb[0].mxu0
    %279 = vdwg.mxu0
    %v280 = vmax.f32 %v274, 0.0
    %v281 = vmax.f32 %v277, 0.0
    %v282 = vpack.c.bf16 %v281, %v280
    %v283 = vld [vmem:[#allocation8] sm:$0xf]
    %v284 = vld [vmem:[#allocation8 + $0x4] sm:$0xf]
    %v285 = vld [vmem:[#allocation8 + $0x8] sm:$0xf]
    %v286 = vld [vmem:[#allocation8 + $0xc] sm:$0xf]
    %v287 = vld [vmem:[#allocation8 + $0x10] sm:$0xf]
    %v288 = vld [vmem:[#allocation8 + $0x14] sm:$0xf]
    %v289 = vld [vmem:[#allocation8 + $0x18] sm:$0xf]
    %v290 = vld [vmem:[#allocation8 + $0x1c] sm:$0xf]
    %v291 = vld [vmem:[#allocation8 + $0x20] sm:$0xf]
    %v292 = vld [vmem:[#allocation8 + $0x24] sm:$0xf]
    %v293 = vld [vmem:[#allocation8 + $0x28] sm:$0xf]
    %v294 = vld [vmem:[#allocation8 + $0x2c] sm:$0xf]
    %v295 = vld [vmem:[#allocation8 + $0x30] sm:$0xf]
    %v296 = vld [vmem:[#allocation8 + $0x34] sm:$0xf]
    %v297 = vld [vmem:[#allocation8 + $0x38] sm:$0xf]
    %v298 = vld [vmem:[#allocation8 + $0x3c] sm:$0xf]
    %v299 = vld [vmem:[%s6] sm:$0x1]
    %v301 = vlaneseq
    %v302 = vshrl.u32 %v301, 7
    %v303 = vsub.s32 0, %v302
    %v304 = vrot.slane %v299, %v303
    %v322 = vunpack.c.l.b16 %v283
    %v323 = vunpack.c.l.b16 %v284
    %v324 = vunpack.c.l.b16 %v285
    %v325 = vunpack.c.l.b16 %v286
    %v326 = vunpack.c.l.b16 %v287
    %v327 = vunpack.c.l.b16 %v288
    %v328 = vunpack.c.l.b16 %v289
    %v329 = vunpack.c.l.b16 %v290
    %v330 = vunpack.c.l.b16 %v291
    %v331 = vunpack.c.l.b16 %v292
    %v332 = vunpack.c.l.b16 %v293
    %v333 = vunpack.c.l.b16 %v294
    %v334 = vunpack.c.l.b16 %v295
    %v335 = vunpack.c.l.b16 %v296
    %v336 = vunpack.c.l.b16 %v297
    %v337 = vunpack.c.l.b16 %v298
    %v338 = vpack.c.b16 %v323, %v322
    %v339 = vpack.c.b16 %v325, %v324
    %v340 = vpack.c.b16 %v327, %v326
    %v341 = vpack.c.b16 %v329, %v328
    %v342 = vpack.c.b16 %v331, %v330
    %v343 = vpack.c.b16 %v333, %v332
    %v344 = vpack.c.b16 %v335, %v334
    %v345 = vpack.c.b16 %v337, %v336
    %354 = vmatprep.subr.bf16.mxu0 0
    %355 = vmatpush1.bf16.msra.mxu0 %v338
    %356 = vmatprep.subr.bf16.mxu0 0
    %357 = vmatpush1.bf16.msra.mxu0 %v339
    %358 = vmatprep.subr.bf16.mxu0 0
    %359 = vmatpush1.bf16.msra.mxu0 %v340
    %360 = vmatprep.subr.bf16.mxu0 0
    %361 = vmatpush1.bf16.msra.mxu0 %v341
    %362 = vmatprep.subr.bf16.mxu0 0
    %363 = vmatpush1.bf16.msra.mxu0 %v342
    %364 = vmatprep.subr.bf16.mxu0 0
    %365 = vmatpush1.bf16.msra.mxu0 %v343
    %366 = vmatprep.subr.bf16.mxu0 0
    %367 = vmatpush1.bf16.msra.mxu0 %v344
    %368 = vmatprep.subr.bf16.mxu0 0
    %369 = vmatpush1.bf16.msra.mxu0 %v345
    %370 = vmatprep.subr.bf16.mxu0 0
    %371 = vmatpush1.bf16.msra.mxu0 0
    %372 = vmatprep.subr.bf16.mxu0 0
    %373 = vmatpush1.bf16.msra.mxu0 0
    %374 = vmatprep.subr.bf16.mxu0 0
    %375 = vmatpush1.bf16.msra.mxu0 0
    %376 = vmatprep.subr.bf16.mxu0 0
    %377 = vmatpush1.bf16.msra.mxu0 0
    %378 = vmatprep.subr.bf16.mxu0 0
    %379 = vmatpush1.bf16.msra.mxu0 0
    %380 = vmatprep.subr.bf16.mxu0 0
    %381 = vmatpush1.bf16.msra.mxu0 0
    %382 = vmatprep.subr.bf16.mxu0 0
    %383 = vmatpush1.bf16.msra.mxu0 0
    %384 = vmatprep.subr.bf16.mxu0 0
    %385 = vmatpush1.bf16.msra.mxu0 0
    %386 = vmatprep.mubr.bf16.mxu0 0
    %387 = vmatmul.mubr.bf16.gmra.mrb[0].mxu0 %v282
    %v388 = vpop.f32.mrb[0].mxu0
    %v389 = vadd.f32 %v304, %v388
    %v390 = vpop.f32.mrb[0].mxu0
    %v391 = vpop.f32.mrb[0].mxu0
    %v392 = vadd.f32 %v304, %v391
    %v393 = vpop.f32.mrb[0].mxu0
    %394 = vdwg.mxu0
    %v395 = vmax.f32 %v389, 0.0
    %v396 = vmax.f32 %v392, 0.0
    %v397 = vpack.c.bf16 %v396, %v395
    %v398 = vld [vmem:[#allocation10] sm:$0xf]
    %v399 = vld [vmem:[#allocation10 + $0x4] sm:$0xf]
    %v400 = vld [vmem:[#allocation10 + $0x8] sm:$0xf]
    %v401 = vld [vmem:[#allocation10 + $0xc] sm:$0xf]
    %v402 = vld [vmem:[#allocation10 + $0x10] sm:$0xf]
    %v403 = vld [vmem:[#allocation10 + $0x14] sm:$0xf]
    %v404 = vld [vmem:[#allocation10 + $0x18] sm:$0xf]
    %v405 = vld [vmem:[#allocation10 + $0x1c] sm:$0xf]
    %v406 = vld [vmem:[#allocation10 + $0x20] sm:$0xf]
    %v407 = vld [vmem:[#allocation10 + $0x24] sm:$0xf]
    %v408 = vld [vmem:[#allocation10 + $0x28] sm:$0xf]
    %v409 = vld [vmem:[#allocation10 + $0x2c] sm:$0xf]
    %v410 = vld [vmem:[#allocation10 + $0x30] sm:$0xf]
    %v411 = vld [vmem:[#allocation10 + $0x34] sm:$0xf]
    %v412 = vld [vmem:[#allocation10 + $0x38] sm:$0xf]
    %v413 = vld [vmem:[#allocation10 + $0x3c] sm:$0xf]
    %v414 = vld [vmem:[%s8] sm:$0x1]
    %v416 = vlaneseq
    %v417 = vshrl.u32 %v416, 7
    %v418 = vsub.s32 0, %v417
    %v419 = vrot.slane %v414, %v418
    %v437 = vunpack.c.l.b16 %v398
    %v438 = vunpack.c.l.b16 %v399
    %v439 = vunpack.c.l.b16 %v400
    %v440 = vunpack.c.l.b16 %v401
    %v441 = vunpack.c.l.b16 %v402
    %v442 = vunpack.c.l.b16 %v403
    %v443 = vunpack.c.l.b16 %v404
    %v444 = vunpack.c.l.b16 %v405
    %v445 = vunpack.c.l.b16 %v406
    %v446 = vunpack.c.l.b16 %v407
    %v447 = vunpack.c.l.b16 %v408
    %v448 = vunpack.c.l.b16 %v409
    %v449 = vunpack.c.l.b16 %v410
    %v450 = vunpack.c.l.b16 %v411
    %v451 = vunpack.c.l.b16 %v412
    %v452 = vunpack.c.l.b16 %v413
    %v453 = vpack.c.b16 %v438, %v437
    %v454 = vpack.c.b16 %v440, %v439
    %v455 = vpack.c.b16 %v442, %v441
    %v456 = vpack.c.b16 %v444, %v443
    %v457 = vpack.c.b16 %v446, %v445
    %v458 = vpack.c.b16 %v448, %v447
    %v459 = vpack.c.b16 %v450, %v449
    %v460 = vpack.c.b16 %v452, %v451
    %469 = vmatprep.subr.bf16.mxu0 0
    %470 = vmatpush1.bf16.msra.mxu0 %v453
    %471 = vmatprep.subr.bf16.mxu0 0
    %472 = vmatpush1.bf16.msra.mxu0 %v454
    %473 = vmatprep.subr.bf16.mxu0 0
    %474 = vmatpush1.bf16.msra.mxu0 %v455
    %475 = vmatprep.subr.bf16.mxu0 0
    %476 = vmatpush1.bf16.msra.mxu0 %v456
    %477 = vmatprep.subr.bf16.mxu0 0
    %478 = vmatpush1.bf16.msra.mxu0 %v457
    %479 = vmatprep.subr.bf16.mxu0 0
    %480 = vmatpush1.bf16.msra.mxu0 %v458
    %481 = vmatprep.subr.bf16.mxu0 0
    %482 = vmatpush1.bf16.msra.mxu0 %v459
    %483 = vmatprep.subr.bf16.mxu0 0
    %484 = vmatpush1.bf16.msra.mxu0 %v460
    %485 = vmatprep.subr.bf16.mxu0 0
    %486 = vmatpush1.bf16.msra.mxu0 0
    %487 = vmatprep.subr.bf16.mxu0 0
    %488 = vmatpush1.bf16.msra.mxu0 0
    %489 = vmatprep.subr.bf16.mxu0 0
    %490 = vmatpush1.bf16.msra.mxu0 0
    %491 = vmatprep.subr.bf16.mxu0 0
    %492 = vmatpush1.bf16.msra.mxu0 0
    %493 = vmatprep.subr.bf16.mxu0 0
    %494 = vmatpush1.bf16.msra.mxu0 0
    %495 = vmatprep.subr.bf16.mxu0 0
    %496 = vmatpush1.bf16.msra.mxu0 0
    %497 = vmatprep.subr.bf16.mxu0 0
    %498 = vmatpush1.bf16.msra.mxu0 0
    %499 = vmatprep.subr.bf16.mxu0 0
    %500 = vmatpush1.bf16.msra.mxu0 0
    %501 = vmatprep.mubr.bf16.mxu0 0
    %502 = vmatmul.mubr.bf16.gmra.mrb[0].mxu0 %v397
    %v503 = vpop.f32.mrb[0].mxu0
    %v504 = vadd.f32 %v419, %v503
    %v505 = vpop.f32.mrb[0].mxu0
    %v506 = vpop.f32.mrb[0].mxu0
    %v507 = vadd.f32 %v419, %v506
    %v508 = vpop.f32.mrb[0].mxu0
    %509 = vdwg.mxu0
    %v510 = vpack.c.bf16 %v507, %v504
    %v512 = vunpack.c.l.b16 %v510
    %v513 = vunpack.c.h.b16 %v510
    %v514 = vpack.c.b16 %v512, %v512
    %v515 = vpack.c.b16 %v513, %v513
    %518 = vst [vmem:[#allocation11] sm:$0xf] %v514
    %519 = vst [vmem:[#allocation11 + $0x4] sm:$0xf] %v515
    // Predicated region
    $region58: #{tpu_custom_call.1} parent=1 // pred_check
      _
    $region59: #{tpu_custom_call.1} parent=1 // pred_check_branch
      %521 = sbr.rel (0) target = $region61
    $region60: #{tpu_custom_call.1} parent=1 // pred_region
      %s523 = ssub.s32 128, 128
      %524 = vsyncadd [#allocation4], %s523
      %s525 = sshll.u32 [#allocation11], 4
      %s526 = int_to_ptr.vmem [resolvable:$true] %s525
      %531 = dma.vmem_to_hbm [thread:$0]  %s526, 128, %s9, [#allocation4], 64, 64, 4
    $region61: #{tpu_custom_call.1} parent=1 // pred_fallthru
      _
    // Predicated region
    $region62: #{tpu_custom_call.1} parent=1 // pred_check
      _
    $region63: #{tpu_custom_call.1} parent=1 // pred_check_branch
      %533 = sbr.rel (0) target = $region65
    $region64: #{tpu_custom_call.1} parent=1 // pred_region
      %534 = dma.done [#allocation4], 128
    $region65: #{tpu_custom_call.1} parent=1 // pred_fallthru
      _
    %535 = vsyncpa [#allocation3], 1
    %536 = vsyncpa [#allocation6], 1
    %537 = vsyncpa [#allocation9], 1
    %538 = vsyncpa [#allocation4], 1

// kernel: tpu_custom_call.1
$region0: #{tpu_custom_call.1}
  #allocation0 [shape = 'u32[]', space=smem, size = 0x4, offset = 0x4, fixed_abs, tag = 'smem constant byte address 0x4 - core index']
  #allocation1 [shape = 'u32[144,128]{1,0:T(1,128)}', space=vmem, size = 0x12000, scoped, tag = 'internal scratch']
  %s0 = inlined_call_operand.hbm [shape: f32[16,16], index: 0, kind: input, shape index: {}]
  %s1 = inlined_call_operand.hbm [shape: bf16[16,128], index: 1, kind: input, shape index: {}]
  %s2 = inlined_call_operand.vmem [shape: f32[1,128], index: 2, kind: input, shape index: {}]
  %s3 = inlined_call_operand.hbm [shape: bf16[128,128], index: 3, kind: input, shape index: {}]
  %s4 = inlined_call_operand.vmem [shape: f32[1,128], index: 4, kind: input, shape index: {}]
  %s5 = inlined_call_operand.hbm [shape: bf16[128,128], index: 5, kind: input, shape index: {}]
  %s6 = inlined_call_operand.vmem [shape: f32[1,128], index: 6, kind: input, shape index: {}]
  %s7 = inlined_call_operand.hbm [shape: bf16[128,128], index: 7, kind: input, shape index: {}]
  %s8 = inlined_call_operand.vmem [shape: f32[1,128], index: 8, kind: input, shape index: {}]
  %s9 = inlined_call_operand.hbm [shape: bf16[16,128], index: 9, kind: output, shape index: {}]
  %s10 = sld [smem:[#allocation0]]
  $region66: #{tpu_custom_call.1} parent=0
    _
  %s12 = ssub.s32 1, %s10
  %s13 = scalar_select 0, %s12, %s10
  $region1: #{tpu_custom_call.1} parent=0
    #allocation2 [shape = 'u8[8192]{0}', space=vmem, size = 0x2000, scoped, tag = 'input window, operand 0, single buffered']
    #allocation3 [shape = 's32[1]{0}', space=sflag, size = 0x4, scoped, tag = 'scoped memory for tpu_custom_call.1']
    #allocation4 [shape = 's32[1]{0}', space=sflag, size = 0x4, scoped, tag = 'scoped memory for tpu_custom_call.1']
    #allocation5 [shape = 'u8[4096]{0}', space=vmem, size = 0x1000, scoped, tag = 'input window, operand 1, single buffered']
    #allocation6 [shape = 's32[1]{0}', space=sflag, size = 0x4, scoped, tag = 'scoped memory for tpu_custom_call.1']
    #allocation7 [shape = 'u8[32768]{0}', space=vmem, size = 0x8000, scoped, tag = 'input window, operand 3, single buffered']
    #allocation8 [shape = 'u8[32768]{0}', space=vmem, size = 0x8000, scoped, tag = 'input window, operand 5, single buffered']
    #allocation9 [shape = 's32[1]{0}', space=sflag, size = 0x4, scoped, tag = 'scoped memory for tpu_custom_call.1']
    #allocation10 [shape = 'u8[32768]{0}', space=vmem, size = 0x8000, scoped, tag = 'input window, operand 7, single buffered']
    #allocation11 [shape = 'u8[4096]{0}', space=vmem, size = 0x1000, scoped, tag = 'output window, operand 0, single buffered']
    %14 = vsyncpa [#allocation3], 0
    %15 = vsyncpa [#allocation6], 0
    %16 = vsyncpa [#allocation9], 0
    %17 = vsyncpa [#allocation4], 0
    // Predicated region
    $region2: #{tpu_custom_call.1} parent=1 // pred_check
      _
    $region3: #{tpu_custom_call.1} parent=1 // pred_check_branch
      %19 = sbr.rel (0) target = $region5
    $region4: #{tpu_custom_call.1} parent=1 // pred_region
      %s21 = ssub.s32 256, 256
      %22 = vsyncadd [#allocation3], %s21
      %s23 = sshll.u32 [#allocation2], 4
      %s24 = int_to_ptr.vmem [resolvable:$true] %s23
      %29 = dma.hbm_to_vmem [thread:$0]  %s0, 256, %s24, [#allocation3], 128, 128, 8
    $region5: #{tpu_custom_call.1} parent=1 // pred_fallthru
      _
    // Predicated region
    $region6: #{tpu_custom_call.1} parent=1 // pred_check
      _
    $region7: #{tpu_custom_call.1} parent=1 // pred_check_branch
      %31 = sbr.rel (0) target = $region9
    $region8: #{tpu_custom_call.1} parent=1 // pred_region
      %s33 = ssub.s32 128, 128
      %34 = vsyncadd [#allocation6], %s33
      %s35 = sshll.u32 [#allocation5], 4
      %s36 = int_to_ptr.vmem [resolvable:$true] %s35
      %41 = dma.hbm_to_vmem [thread:$0]  %s1, 128, %s36, [#allocation6], 64, 64, 4
    $region9: #{tpu_custom_call.1} parent=1 // pred_fallthru
      _
    // Predicated region
    $region10: #{tpu_custom_call.1} parent=1 // pred_check
      _
    $region11: #{tpu_custom_call.1} parent=1 // pred_check_branch
      %43 = sbr.rel (0) target = $region13
    $region12: #{tpu_custom_call.1} parent=1 // pred_region
      _
    $region13: #{tpu_custom_call.1} parent=1 // pred_fallthru
      _
    // Predicated region
    $region14: #{tpu_custom_call.1} parent=1 // pred_check
      _
    $region15: #{tpu_custom_call.1} parent=1 // pred_check_branch
      %45 = sbr.rel (0) target = $region17
    $region16: #{tpu_custom_call.1} parent=1 // pred_region
      %s47 = ssub.s32 1024, 1024
      %48 = vsyncadd [#allocation6], %s47
      %s49 = sshll.u32 [#allocation7], 4
      %s50 = int_to_ptr.vmem [resolvable:$true] %s49
      %55 = dma.hbm_to_vmem [thread:$0]  %s3, 1024, %s50, [#allocation6], 64, 64, 4
    $region17: #{tpu_custom_call.1} parent=1 // pred_fallthru
      _
    // Predicated region
    $region18: #{tpu_custom_call.1} parent=1 // pred_check
      _
    $region19: #{tpu_custom_call.1} parent=1 // pred_check_branch
      %57 = sbr.rel (0) target = $region21
    $region20: #{tpu_custom_call.1} parent=1 // pred_region
      _
    $region21: #{tpu_custom_call.1} parent=1 // pred_fallthru
      _
    // Predicated region
    $region22: #{tpu_custom_call.1} parent=1 // pred_check
      _
    $region23: #{tpu_custom_call.1} parent=1 // pred_check_branch
      %59 = sbr.rel (0) target = $region25
    $region24: #{tpu_custom_call.1} parent=1 // pred_region
      %s61 = ssub.s32 1024, 1024
      %62 = vsyncadd [#allocation9], %s61
      %s63 = sshll.u32 [#allocation8], 4
      %s64 = int_to_ptr.vmem [resolvable:$true] %s63
      %69 = dma.hbm_to_vmem [thread:$0]  %s5, 1024, %s64, [#allocation9], 64, 64, 4
    $region25: #{tpu_custom_call.1} parent=1 // pred_fallthru
      _
    // Predicated region
    $region26: #{tpu_custom_call.1} parent=1 // pred_check
      _
    $region27: #{tpu_custom_call.1} parent=1 // pred_check_branch
      %71 = sbr.rel (0) target = $region29
    $region28: #{tpu_custom_call.1} parent=1 // pred_region
      _
    $region29: #{tpu_custom_call.1} parent=1 // pred_fallthru
      _
    // Predicated region
    $region30: #{tpu_custom_call.1} parent=1 // pred_check
      _
    $region31: #{tpu_custom_call.1} parent=1 // pred_check_branch
      %73 = sbr.rel (0) target = $region33
    $region32: #{tpu_custom_call.1} parent=1 // pred_region
      %s75 = ssub.s32 1024, 1024
      %76 = vsyncadd [#allocation9], %s75
      %s77 = sshll.u32 [#allocation10], 4
      %s78 = int_to_ptr.vmem [resolvable:$true] %s77
      %83 = dma.hbm_to_vmem [thread:$0]  %s7, 1024, %s78, [#allocation9], 64, 64, 4
    $region33: #{tpu_custom_call.1} parent=1 // pred_fallthru
      _
    // Predicated region
    $region34: #{tpu_custom_call.1} parent=1 // pred_check
      _
    $region35: #{tpu_custom_call.1} parent=1 // pred_check_branch
      %85 = sbr.rel (0) target = $region37
    $region36: #{tpu_custom_call.1} parent=1 // pred_region
      _
    $region37: #{tpu_custom_call.1} parent=1 // pred_fallthru
      _
    // Predicated region
    $region38: #{tpu_custom_call.1} parent=1 // pred_check
      _
    $region39: #{tpu_custom_call.1} parent=1 // pred_check_branch
      %87 = sbr.rel (0) target = $region41
    $region40: #{tpu_custom_call.1} parent=1 // pred_region
      %88 = dma.done [#allocation3], 256
    $region41: #{tpu_custom_call.1} parent=1 // pred_fallthru
      _
    // Predicated region
    $region42: #{tpu_custom_call.1} parent=1 // pred_check
      _
    $region43: #{tpu_custom_call.1} parent=1 // pred_check_branch
      %90 = sbr.rel (0) target = $region45
    $region44: #{tpu_custom_call.1} parent=1 // pred_region
      %91 = dma.done [#allocation6], 128
    $region45: #{tpu_custom_call.1} parent=1 // pred_fallthru
      _
    // Predicated region
    $region46: #{tpu_custom_call.1} parent=1 // pred_check
      _
    $region47: #{tpu_custom_call.1} parent=1 // pred_check_branch
      %93 = sbr.rel (0) target = $region49
    $region48: #{tpu_custom_call.1} parent=1 // pred_region
      %94 = dma.done [#allocation6], 1024
    $region49: #{tpu_custom_call.1} parent=1 // pred_fallthru
      _
    // Predicated region
    $region50: #{tpu_custom_call.1} parent=1 // pred_check
      _
    $region51: #{tpu_custom_call.1} parent=1 // pred_check_branch
      %96 = sbr.rel (0) target = $region53
    $region52: #{tpu_custom_call.1} parent=1 // pred_region
      %97 = dma.done [#allocation9], 1024
    $region53: #{tpu_custom_call.1} parent=1 // pred_fallthru
      _
    // Predicated region
    $region54: #{tpu_custom_call.1} parent=1 // pred_check
      _
    $region55: #{tpu_custom_call.1} parent=1 // pred_check_branch
      %99 = sbr.rel (0) target = $region57
    $region56: #{tpu_custom_call.1} parent=1 // pred_region
      %100 = dma.done [#allocation9], 1024
    $region57: #{tpu_custom_call.1} parent=1 // pred_fallthru
      _
    %v102 = vld [vmem:[#allocation2] sm:$0xff]
    %v103 = vld [vmem:[#allocation2 + $0x8] sm:$0xff]
    %v104 = vpack.c.bf16 %v103, %v102
    %v105 = vld [vmem:[#allocation5] sm:$0xf]
    %v106 = vld [vmem:[#allocation5 + $0x4] sm:$0xf]
    %v107 = vld [vmem:[%s2] sm:$0x1]
    %v109 = vlaneseq
    %v110 = vshrl.u32 %v109, 7
    %v111 = vsub.s32 0, %v110
    %v112 = vrot.slane %v107, %v111
    %v116 = vunpack.c.l.b16 %v105
    %v117 = vunpack.c.l.b16 %v106
    %v118 = vpack.c.b16 %v117, %v116
    %vm120 = vcmask 130048
    %v122 = vsel %vm120, %v104, 0
    %124 = vmatprep.subr.bf16.mxu0 0
    %125 = vmatpush1.bf16.msra.mxu0 %v118
    %126 = vmatprep.subr.bf16.mxu0 0
    %127 = vmatpush1.bf16.msra.mxu0 0
    %128 = vmatprep.subr.bf16.mxu0 0
    %129 = vmatpush1.bf16.msra.mxu0 0
    %130 = vmatprep.subr.bf16.mxu0 0
    %131 = vmatpush1.bf16.msra.mxu0 0
    %132 = vmatprep.subr.bf16.mxu0 0
    %133 = vmatpush1.bf16.msra.mxu0 0
    %134 = vmatprep.subr.bf16.mxu0 0
    %135 = vmatpush1.bf16.msra.mxu0 0
    %136 = vmatprep.subr.bf16.mxu0 0
    %137 = vmatpush1.bf16.msra.mxu0 0
    %138 = vmatprep.subr.bf16.mxu0 0
    %139 = vmatpush1.bf16.msra.mxu0 0
    %140 = vmatprep.subr.bf16.mxu0 0
    %141 = vmatpush1.bf16.msra.mxu0 0
    %142 = vmatprep.subr.bf16.mxu0 0
    %143 = vmatpush1.bf16.msra.mxu0 0
    %144 = vmatprep.subr.bf16.mxu0 0
    %145 = vmatpush1.bf16.msra.mxu0 0
    %146 = vmatprep.subr.bf16.mxu0 0
    %147 = vmatpush1.bf16.msra.mxu0 0
    %148 = vmatprep.subr.bf16.mxu0 0
    %149 = vmatpush1.bf16.msra.mxu0 0
    %150 = vmatprep.subr.bf16.mxu0 0
    %151 = vmatpush1.bf16.msra.mxu0 0
    %152 = vmatprep.subr.bf16.mxu0 0
    %153 = vmatpush1.bf16.msra.mxu0 0
    %154 = vmatprep.subr.bf16.mxu0 0
    %155 = vmatpush1.bf16.msra.mxu0 0
    %156 = vmatprep.mubr.bf16.mxu0 0
    %157 = vmatmul.mubr.bf16.gmra.mrb[0].mxu0 %v122
    %v158 = vpop.f32.mrb[0].mxu0
    %v159 = vadd.f32 %v112, %v158
    %v160 = vpop.f32.mrb[0].mxu0
    %v161 = vpop.f32.mrb[0].mxu0
    %v162 = vadd.f32 %v112, %v161
    %v163 = vpop.f32.mrb[0].mxu0
    %164 = vdwg.mxu0
    %v165 = vmax.f32 %v159, 0.0
    %v166 = vmax.f32 %v162, 0.0
    %v167 = vpack.c.bf16 %v166, %v165
    %v168 = vld [vmem:[#allocation7] sm:$0xf]
    %v169 = vld [vmem:[#allocation7 + $0x4] sm:$0xf]
    %v170 = vld [vmem:[#allocation7 + $0x8] sm:$0xf]
    %v171 = vld [vmem:[#allocation7 + $0xc] sm:$0xf]
    %v172 = vld [vmem:[#allocation7 + $0x10] sm:$0xf]
    %v173 = vld [vmem:[#allocation7 + $0x14] sm:$0xf]
    %v174 = vld [vmem:[#allocation7 + $0x18] sm:$0xf]
    %v175 = vld [vmem:[#allocation7 + $0x1c] sm:$0xf]
    %v176 = vld [vmem:[#allocation7 + $0x20] sm:$0xf]
    %v177 = vld [vmem:[#allocation7 + $0x24] sm:$0xf]
    %v178 = vld [vmem:[#allocation7 + $0x28] sm:$0xf]
    %v179 = vld [vmem:[#allocation7 + $0x2c] sm:$0xf]
    %v180 = vld [vmem:[#allocation7 + $0x30] sm:$0xf]
    %v181 = vld [vmem:[#allocation7 + $0x34] sm:$0xf]
    %v182 = vld [vmem:[#allocation7 + $0x38] sm:$0xf]
    %v183 = vld [vmem:[#allocation7 + $0x3c] sm:$0xf]
    %v184 = vld [vmem:[%s4] sm:$0x1]
    %v186 = vlaneseq
    %v187 = vshrl.u32 %v186, 7
    %v188 = vsub.s32 0, %v187
    %v189 = vrot.slane %v184, %v188
    %v207 = vunpack.c.l.b16 %v168
    %v208 = vunpack.c.l.b16 %v169
    %v209 = vunpack.c.l.b16 %v170
    %v210 = vunpack.c.l.b16 %v171
    %v211 = vunpack.c.l.b16 %v172
    %v212 = vunpack.c.l.b16 %v173
    %v213 = vunpack.c.l.b16 %v174
    %v214 = vunpack.c.l.b16 %v175
    %v215 = vunpack.c.l.b16 %v176
    %v216 = vunpack.c.l.b16 %v177
    %v217 = vunpack.c.l.b16 %v178
    %v218 = vunpack.c.l.b16 %v179
    %v219 = vunpack.c.l.b16 %v180
    %v220 = vunpack.c.l.b16 %v181
    %v221 = vunpack.c.l.b16 %v182
    %v222 = vunpack.c.l.b16 %v183
    %v223 = vpack.c.b16 %v208, %v207
    %v224 = vpack.c.b16 %v210, %v209
    %v225 = vpack.c.b16 %v212, %v211
    %v226 = vpack.c.b16 %v214, %v213
    %v227 = vpack.c.b16 %v216, %v215
    %v228 = vpack.c.b16 %v218, %v217
    %v229 = vpack.c.b16 %v220, %v219
    %v230 = vpack.c.b16 %v222, %v221
    %239 = vmatprep.subr.bf16.mxu0 0
    %240 = vmatpush1.bf16.msra.mxu0 %v223
    %241 = vmatprep.subr.bf16.mxu0 0
    %242 = vmatpush1.bf16.msra.mxu0 %v224
    %243 = vmatprep.subr.bf16.mxu0 0
    %244 = vmatpush1.bf16.msra.mxu0 %v225
    %245 = vmatprep.subr.bf16.mxu0 0
    %246 = vmatpush1.bf16.msra.mxu0 %v226
    %247 = vmatprep.subr.bf16.mxu0 0
    %248 = vmatpush1.bf16.msra.mxu0 %v227
    %249 = vmatprep.subr.bf16.mxu0 0
    %250 = vmatpush1.bf16.msra.mxu0 %v228
    %251 = vmatprep.subr.bf16.mxu0 0
    %252 = vmatpush1.bf16.msra.mxu0 %v229
    %253 = vmatprep.subr.bf16.mxu0 0
    %254 = vmatpush1.bf16.msra.mxu0 %v230
    %255 = vmatprep.subr.bf16.mxu0 0
    %256 = vmatpush1.bf16.msra.mxu0 0
    %257 = vmatprep.subr.bf16.mxu0 0
    %258 = vmatpush1.bf16.msra.mxu0 0
    %259 = vmatprep.subr.bf16.mxu0 0
    %260 = vmatpush1.bf16.msra.mxu0 0
    %261 = vmatprep.subr.bf16.mxu0 0
    %262 = vmatpush1.bf16.msra.mxu0 0
    %263 = vmatprep.subr.bf16.mxu0 0
    %264 = vmatpush1.bf16.msra.mxu0 0
    %265 = vmatprep.subr.bf16.mxu0 0
    %266 = vmatpush1.bf16.msra.mxu0 0
    %267 = vmatprep.subr.bf16.mxu0 0
    %268 = vmatpush1.bf16.msra.mxu0 0
    %269 = vmatprep.subr.bf16.mxu0 0
    %270 = vmatpush1.bf16.msra.mxu0 0
    %271 = vmatprep.mubr.bf16.mxu0 0
    %272 = vmatmul.mubr.bf16.gmra.mrb[0].mxu0 %v167
    %v273 = vpop.f32.mrb[0].mxu0
    %v274 = vadd.f32 %v189, %v273
    %v275 = vpop.f32.mrb[0].mxu0
    %v276 = vpop.f32.mrb[0].mxu0
    %v277 = vadd.f32 %v189, %v276
    %v278 = vpop.f32.mrb[0].mxu0
    %279 = vdwg.mxu0
    %v280 = vmax.f32 %v274, 0.0
    %v281 = vmax.f32 %v277, 0.0
    %v282 = vpack.c.bf16 %v281, %v280
    %v283 = vld [vmem:[#allocation8] sm:$0xf]
    %v284 = vld [vmem:[#allocation8 + $0x4] sm:$0xf]
    %v285 = vld [vmem:[#allocation8 + $0x8] sm:$0xf]
    %v286 = vld [vmem:[#allocation8 + $0xc] sm:$0xf]
    %v287 = vld [vmem:[#allocation8 + $0x10] sm:$0xf]
    %v288 = vld [vmem:[#allocation8 + $0x14] sm:$0xf]
    %v289 = vld [vmem:[#allocation8 + $0x18] sm:$0xf]
    %v290 = vld [vmem:[#allocation8 + $0x1c] sm:$0xf]
    %v291 = vld [vmem:[#allocation8 + $0x20] sm:$0xf]
    %v292 = vld [vmem:[#allocation8 + $0x24] sm:$0xf]
    %v293 = vld [vmem:[#allocation8 + $0x28] sm:$0xf]
    %v294 = vld [vmem:[#allocation8 + $0x2c] sm:$0xf]
    %v295 = vld [vmem:[#allocation8 + $0x30] sm:$0xf]
    %v296 = vld [vmem:[#allocation8 + $0x34] sm:$0xf]
    %v297 = vld [vmem:[#allocation8 + $0x38] sm:$0xf]
    %v298 = vld [vmem:[#allocation8 + $0x3c] sm:$0xf]
    %v299 = vld [vmem:[%s6] sm:$0x1]
    %v301 = vlaneseq
    %v302 = vshrl.u32 %v301, 7
    %v303 = vsub.s32 0, %v302
    %v304 = vrot.slane %v299, %v303
    %v322 = vunpack.c.l.b16 %v283
    %v323 = vunpack.c.l.b16 %v284
    %v324 = vunpack.c.l.b16 %v285
    %v325 = vunpack.c.l.b16 %v286
    %v326 = vunpack.c.l.b16 %v287
    %v327 = vunpack.c.l.b16 %v288
    %v328 = vunpack.c.l.b16 %v289
    %v329 = vunpack.c.l.b16 %v290
    %v330 = vunpack.c.l.b16 %v291
    %v331 = vunpack.c.l.b16 %v292
    %v332 = vunpack.c.l.b16 %v293
    %v333 = vunpack.c.l.b16 %v294
    %v334 = vunpack.c.l.b16 %v295
    %v335 = vunpack.c.l.b16 %v296
    %v336 = vunpack.c.l.b16 %v297
    %v337 = vunpack.c.l.b16 %v298
    %v338 = vpack.c.b16 %v323, %v322
    %v339 = vpack.c.b16 %v325, %v324
    %v340 = vpack.c.b16 %v327, %v326
    %v341 = vpack.c.b16 %v329, %v328
    %v342 = vpack.c.b16 %v331, %v330
    %v343 = vpack.c.b16 %v333, %v332
    %v344 = vpack.c.b16 %v335, %v334
    %v345 = vpack.c.b16 %v337, %v336
    %354 = vmatprep.subr.bf16.mxu0 0
    %355 = vmatpush1.bf16.msra.mxu0 %v338
    %356 = vmatprep.subr.bf16.mxu0 0
    %357 = vmatpush1.bf16.msra.mxu0 %v339
    %358 = vmatprep.subr.bf16.mxu0 0
    %359 = vmatpush1.bf16.msra.mxu0 %v340
    %360 = vmatprep.subr.bf16.mxu0 0
    %361 = vmatpush1.bf16.msra.mxu0 %v341
    %362 = vmatprep.subr.bf16.mxu0 0
    %363 = vmatpush1.bf16.msra.mxu0 %v342
    %364 = vmatprep.subr.bf16.mxu0 0
    %365 = vmatpush1.bf16.msra.mxu0 %v343
    %366 = vmatprep.subr.bf16.mxu0 0
    %367 = vmatpush1.bf16.msra.mxu0 %v344
    %368 = vmatprep.subr.bf16.mxu0 0
    %369 = vmatpush1.bf16.msra.mxu0 %v345
    %370 = vmatprep.subr.bf16.mxu0 0
    %371 = vmatpush1.bf16.msra.mxu0 0
    %372 = vmatprep.subr.bf16.mxu0 0
    %373 = vmatpush1.bf16.msra.mxu0 0
    %374 = vmatprep.subr.bf16.mxu0 0
    %375 = vmatpush1.bf16.msra.mxu0 0
    %376 = vmatprep.subr.bf16.mxu0 0
    %377 = vmatpush1.bf16.msra.mxu0 0
    %378 = vmatprep.subr.bf16.mxu0 0
    %379 = vmatpush1.bf16.msra.mxu0 0
    %380 = vmatprep.subr.bf16.mxu0 0
    %381 = vmatpush1.bf16.msra.mxu0 0
    %382 = vmatprep.subr.bf16.mxu0 0
    %383 = vmatpush1.bf16.msra.mxu0 0
    %384 = vmatprep.subr.bf16.mxu0 0
    %385 = vmatpush1.bf16.msra.mxu0 0
    %386 = vmatprep.mubr.bf16.mxu0 0
    %387 = vmatmul.mubr.bf16.gmra.mrb[0].mxu0 %v282
    %v388 = vpop.f32.mrb[0].mxu0
    %v389 = vadd.f32 %v304, %v388
    %v390 = vpop.f32.mrb[0].mxu0
    %v391 = vpop.f32.mrb[0].mxu0
    %v392 = vadd.f32 %v304, %v391
    %v393 = vpop.f32.mrb[0].mxu0
    %394 = vdwg.mxu0
    %v395 = vmax.f32 %v389, 0.0
    %v396 = vmax.f32 %v392, 0.0
    %v397 = vpack.c.bf16 %v396, %v395
    %v398 = vld [vmem:[#allocation10] sm:$0xf]
    %v399 = vld [vmem:[#allocation10 + $0x4] sm:$0xf]
    %v400 = vld [vmem:[#allocation10 + $0x8] sm:$0xf]
    %v401 = vld [vmem:[#allocation10 + $0xc] sm:$0xf]
    %v402 = vld [vmem:[#allocation10 + $0x10] sm:$0xf]
    %v403 = vld [vmem:[#allocation10 + $0x14] sm:$0xf]
    %v404 = vld [vmem:[#allocation10 + $0x18] sm:$0xf]
    %v405 = vld [vmem:[#allocation10 + $0x1c] sm:$0xf]
    %v406 = vld [vmem:[#allocation10 + $0x20] sm:$0xf]
    %v407 = vld [vmem:[#allocation10 + $0x24] sm:$0xf]
    %v408 = vld [vmem:[#allocation10 + $0x28] sm:$0xf]
    %v409 = vld [vmem:[#allocation10 + $0x2c] sm:$0xf]
    %v410 = vld [vmem:[#allocation10 + $0x30] sm:$0xf]
    %v411 = vld [vmem:[#allocation10 + $0x34] sm:$0xf]
    %v412 = vld [vmem:[#allocation10 + $0x38] sm:$0xf]
    %v413 = vld [vmem:[#allocation10 + $0x3c] sm:$0xf]
    %v414 = vld [vmem:[%s8] sm:$0x1]
    %v416 = vlaneseq
    %v417 = vshrl.u32 %v416, 7
    %v418 = vsub.s32 0, %v417
    %v419 = vrot.slane %v414, %v418
    %v437 = vunpack.c.l.b16 %v398
    %v438 = vunpack.c.l.b16 %v399
    %v439 = vunpack.c.l.b16 %v400
    %v440 = vunpack.c.l.b16 %v401
    %v441 = vunpack.c.l.b16 %v402
    %v442 = vunpack.c.l.b16 %v403
    %v443 = vunpack.c.l.b16 %v404
    %v444 = vunpack.c.l.b16 %v405
    %v445 = vunpack.c.l.b16 %v406
    %v446 = vunpack.c.l.b16 %v407
    %v447 = vunpack.c.l.b16 %v408
    %v448 = vunpack.c.l.b16 %v409
    %v449 = vunpack.c.l.b16 %v410
    %v450 = vunpack.c.l.b16 %v411
    %v451 = vunpack.c.l.b16 %v412
    %v452 = vunpack.c.l.b16 %v413
    %v453 = vpack.c.b16 %v438, %v437
    %v454 = vpack.c.b16 %v440, %v439
    %v455 = vpack.c.b16 %v442, %v441
    %v456 = vpack.c.b16 %v444, %v443
    %v457 = vpack.c.b16 %v446, %v445
    %v458 = vpack.c.b16 %v448, %v447
    %v459 = vpack.c.b16 %v450, %v449
    %v460 = vpack.c.b16 %v452, %v451
    %469 = vmatprep.subr.bf16.mxu0 0
    %470 = vmatpush1.bf16.msra.mxu0 %v453
    %471 = vmatprep.subr.bf16.mxu0 0
    %472 = vmatpush1.bf16.msra.mxu0 %v454
    %473 = vmatprep.subr.bf16.mxu0 0
    %474 = vmatpush1.bf16.msra.mxu0 %v455
    %475 = vmatprep.subr.bf16.mxu0 0
    %476 = vmatpush1.bf16.msra.mxu0 %v456
    %477 = vmatprep.subr.bf16.mxu0 0
    %478 = vmatpush1.bf16.msra.mxu0 %v457
    %479 = vmatprep.subr.bf16.mxu0 0
    %480 = vmatpush1.bf16.msra.mxu0 %v458
    %481 = vmatprep.subr.bf16.mxu0 0
    %482 = vmatpush1.bf16.msra.mxu0 %v459
    %483 = vmatprep.subr.bf16.mxu0 0
    %484 = vmatpush1.bf16.msra.mxu0 %v460
    %485 = vmatprep.subr.bf16.mxu0 0
    %486 = vmatpush1.bf16.msra.mxu0 0
    %487 = vmatprep.subr.bf16.mxu0 0
    %488 = vmatpush1.bf16.msra.mxu0 0
    %489 = vmatprep.subr.bf16.mxu0 0
    %490 = vmatpush1.bf16.msra.mxu0 0
    %491 = vmatprep.subr.bf16.mxu0 0
    %492 = vmatpush1.bf16.msra.mxu0 0
    %493 = vmatprep.subr.bf16.mxu0 0
    %494 = vmatpush1.bf16.msra.mxu0 0
    %495 = vmatprep.subr.bf16.mxu0 0
    %496 = vmatpush1.bf16.msra.mxu0 0
    %497 = vmatprep.subr.bf16.mxu0 0
    %498 = vmatpush1.bf16.msra.mxu0 0
    %499 = vmatprep.subr.bf16.mxu0 0
    %500 = vmatpush1.bf16.msra.mxu0 0
    %501 = vmatprep.mubr.bf16.mxu0 0
    %502 = vmatmul.mubr.bf16.gmra.mrb[0].mxu0 %v397
    %v503 = vpop.f32.mrb[0].mxu0
    %v504 = vadd.f32 %v419, %v503
    %v505 = vpop.f32.mrb[0].mxu0
    %v506 = vpop.f32.mrb[0].mxu0
    %v507 = vadd.f32 %v419, %v506
    %v508 = vpop.f32.mrb[0].mxu0
    %509 = vdwg.mxu0
    %v510 = vpack.c.bf16 %v507, %v504
    %v512 = vunpack.c.l.b16 %v510
    %v513 = vunpack.c.h.b16 %v510
    %v514 = vpack.c.b16 %v512, %v512
    %v515 = vpack.c.b16 %v513, %v513
    %518 = vst [vmem:[#allocation11] sm:$0xf] %v514
    %519 = vst [vmem:[#allocation11 + $0x4] sm:$0xf] %v515
    // Predicated region
    $region58: #{tpu_custom_call.1} parent=1 // pred_check
      _
    $region59: #{tpu_custom_call.1} parent=1 // pred_check_branch
      %521 = sbr.rel (0) target = $region61
    $region60: #{tpu_custom_call.1} parent=1 // pred_region
      %s523 = ssub.s32 128, 128
      %524 = vsyncadd [#allocation4], %s523
      %s525 = sshll.u32 [#allocation11], 4
      %s526 = int_to_ptr.vmem [resolvable:$true] %s525
      %531 = dma.vmem_to_hbm [thread:$0]  %s526, 128, %s9, [#allocation4], 64, 64, 4
    $region61: #{tpu_custom_call.1} parent=1 // pred_fallthru
      _
    // Predicated region
    $region62: #{tpu_custom_call.1} parent=1 // pred_check
      _
    $region63: #{tpu_custom_call.1} parent=1 // pred_check_branch
      %533 = sbr.rel (0) target = $region65
    $region64: #{tpu_custom_call.1} parent=1 // pred_region
      %534 = dma.done [#allocation4], 128
    $region65: #{tpu_custom_call.1} parent=1 // pred_fallthru
      _
    %535 = vsyncpa [#allocation3], 1
    %536 = vsyncpa [#allocation6], 1
    %537 = vsyncpa [#allocation9], 1
    %538 = vsyncpa [#allocation4], 1

</llo_original>
